<compile_context>
chip_gen: v7x
topology: tpu7x:2x2x1
jax: 0.10.0
libtpu: 0.0.40
codegen_flags: <defaults>
</compile_context>

<pallas_src>
import functools

import jax
import jax.numpy as jnp
from jax.experimental import pallas as pl
from jax.experimental.pallas import tpu as pltpu


def _round_up(n, m):
    return ((n + m - 1) // m) * m


# ---------------------------------------------------------------------------
# Pallas kernel: one batch tile, batch along the lane axis.
#
#   g_ref   : (Gp, tb)     genres (transposed, zero-padded)
#   emb_ref : (3*Kp, tb)   gathered embedding contributions:
#               rows [0, Kp)     -> v[uid] + v[iid]        (inter_1 part)
#               row  Kp          -> w1[uid] + w1[iid]      (linear part)
#               rows [2Kp, 3Kp)  -> v[uid]^2 + v[iid]^2    (inter_2 part)
#   m1_ref  : (2*Kp, Gp)   resident: rows [0,K)=v_g.T, row Kp=w1_g.T (w1 folded in)
#   m2_ref  : (Kp, Gp)     resident: rows [0,K)=(v_g*v_g).T  (precomputed square)
#   w0_ref  : (1, 1)       SMEM scalar bias
#   out_ref : (1, tb)      lane-dense prediction row
# ---------------------------------------------------------------------------
def fm_kernel(g_ref, emb_ref, m1_ref, m2_ref, w0_ref, out_ref, *, kp):
    g = g_ref[...]                                                        # (Gp, tb)
    e = emb_ref[...]                                                      # (3Kp, tb)

    s1 = jnp.dot(m1_ref[...], g, preferred_element_type=jnp.float32)     # (2Kp, tb)
    s2 = jnp.dot(m2_ref[...], g * g, preferred_element_type=jnp.float32) # (Kp, tb)

    inter_1 = s1[:kp, :] + e[:kp, :]                                      # (Kp, tb)
    linear = s1[kp:kp + 1, :] + e[kp:kp + 1, :]                           # (1, tb)
    inter_2 = s2 + e[2 * kp:3 * kp, :]                                    # (Kp, tb)

    interaction = 0.5 * jnp.sum(inter_1 * inter_1 - inter_2,
                                axis=0, keepdims=True)                    # (1, tb)
    out_ref[...] = w0_ref[0, 0] + linear + interaction


def fm_forward_pallas(genres, e1, el, e2, v_g, w1_g, w0, *, max_tb=256):
    """genres: (B, G); e1/e2: (B, K); el: (B, 1); v_g: (G, K); w1_g: (G, 1); w0: (1, 1)."""
    B, K = e1.shape
    G = genres.shape[1]
    Kp = _round_up(max(K, 1), 8)
    Gp = _round_up(max(G, 1), 8)
    # Batch tile on the lane axis: multiple of 128, capped so the grid pipelines
    # (and shards over v7x's two TensorCores) for large B.
    tb = min(max_tb, _round_up(B, 128))
    Bp = _round_up(B, tb)
    f32 = jnp.float32

    def pad_cols(a, n):
        return jnp.pad(a.astype(f32), ((0, 0), (0, n - a.shape[1])))

    # Per-row slabs, transposed so batch is the lane axis.
    emb = jnp.concatenate(
        [pad_cols(e1, Kp), pad_cols(el, Kp), pad_cols(e2, Kp)], axis=1)   # (B, 3Kp)
    emb_t = jnp.pad(emb, ((0, Bp - B), (0, 0))).T                         # (3Kp, Bp)
    g_t = jnp.pad(genres.astype(f32), ((0, Bp - B), (0, Gp - G))).T       # (Gp, Bp)

    # Resident RHS matrices (built once in the wrapper).
    m1 = jnp.zeros((2 * Kp, Gp), f32)
    m1 = m1.at[:K, :G].set(v_g.T.astype(f32))
    m1 = m1.at[Kp, :G].set(w1_g[:, 0].astype(f32))                        # w1 folded in
    m2 = jnp.zeros((Kp, Gp), f32)
    m2 = m2.at[:K, :G].set((v_g * v_g).T.astype(f32))                     # v^2 hoisted

    w0_s = jnp.reshape(w0.astype(f32), (1, 1))

    grid = (Bp // tb,)
    out = pl.pallas_call(
        functools.partial(fm_kernel, kp=Kp),
        out_shape=jax.ShapeDtypeStruct((1, Bp), f32),
        grid_spec=pltpu.PrefetchScalarGridSpec(
            num_scalar_prefetch=0,
            grid=grid,
            in_specs=[
                pl.BlockSpec((Gp, tb), lambda i: (0, i)),       # genres tile
                pl.BlockSpec((3 * Kp, tb), lambda i: (0, i)),   # gathered emb tile
                pl.BlockSpec((2 * Kp, Gp), lambda i: (0, 0)),   # m1 (resident)
                pl.BlockSpec((Kp, Gp), lambda i: (0, 0)),       # m2 (resident)
                pl.BlockSpec(memory_space=pltpu.MemorySpace.SMEM),  # w0 scalar
            ],
            out_specs=pl.BlockSpec((1, tb), lambda i: (0, i)),  # lane-dense output
        ),
        compiler_params=pltpu.CompilerParams(
            dimension_semantics=("parallel",),
            vmem_limit_bytes=32 * 1024 * 1024,
        ),
    )(g_t, emb_t, m1, m2, w0_s)

    return out[0, :B].reshape(B, 1)


# ---------------------------------------------------------------------------
# Glue: mirrors FM.forward. The frozen one-hot embedding lookup is algebraically
# a row gather, so no one-hot matrix is ever materialized.
# ---------------------------------------------------------------------------
def fm_forward(x, params, *, max_uid, max_mid, fm_feature_size):
    U = max_uid + 1
    I = max_mid + 1
    uids = x[:, -fm_feature_size].astype(jnp.int32)
    iids = x[:, -(fm_feature_size - 1)].astype(jnp.int32)
    genres = x[:, -(fm_feature_size - 2):]

    v = params["v"]
    w1 = params["w1"]
    v_u, v_i, v_g = v[:U], v[U:U + I], v[U + I:]
    w1_u, w1_i, w1_g = w1[:U], w1[U:U + I], w1[U + I:]

    # one-hot(id) @ table == table[id]
    # TODO(synk): the data-dependent row gather stays in XLA glue (jnp.take);
    # an in-kernel scalar-prefetch gather would need per-row Element blocks.
    vu = jnp.take(v_u, uids, axis=0)      # (B, K)
    vi = jnp.take(v_i, iids, axis=0)      # (B, K)
    w1u = jnp.take(w1_u, uids, axis=0)    # (B, 1)
    w1i = jnp.take(w1_i, iids, axis=0)    # (B, 1)

    e1 = vu + vi                          # inter_1 embedding part
    el = w1u + w1i                        # linear embedding part
    e2 = vu * vu + vi * vi                # inter_2 embedding part (x**2 of one-hot)

    return fm_forward_pallas(genres, e1, el, e2, v_g, w1_g, params["w0"])


def fm_forward_ref(x, params, *, max_uid, max_mid, fm_feature_size):
    """Pure-JAX reference (literal port of the PyTorch forward)."""
    uids = x[:, -fm_feature_size].astype(jnp.int32)
    iids = x[:, -(fm_feature_size - 1)].astype(jnp.int32)
    genres = x[:, -(fm_feature_size - 2):]
    uemb = jax.nn.one_hot(uids, max_uid + 1, dtype=jnp.float32)
    iemb = jax.nn.one_hot(iids, max_mid + 1, dtype=jnp.float32)
    xd = jnp.concatenate([uemb, iemb, genres], axis=1)
    inter_1 = xd @ params["v"]
    inter_2 = (xd ** 2) @ (params["v"] ** 2)
    interaction = (0.5 * jnp.sum(inter_1 ** 2 - inter_2, axis=1)).reshape(-1, 1)
    return params["w0"][0, 0] + xd @ params["w1"] + interaction


if __name__ == "__main__":
    # Small, deterministic config (mirrors args.*)
    max_uid = 15            # -> u one-hot dim 16
    max_mid = 23            # -> i one-hot dim 24
    fm_feature_size = 8     # uid, iid, 6 genre columns
    k = 8
    init_std = 0.01
    batch = 8
    feature_size = (max_uid + 1) + (max_mid + 1) + (fm_feature_size - 2)  # 46

    key = jax.random.PRNGKey(0)
    k_w0, k_w1, k_v, k_uid, k_iid, k_gen = jax.random.split(key, 6)

    params = {
        "w0": init_std * jax.random.normal(k_w0, (1, 1), dtype=jnp.float32),
        "w1": init_std * jax.random.normal(k_w1, (feature_size, 1), dtype=jnp.float32),
        "v":  init_std * jax.random.normal(k_v, (feature_size, k), dtype=jnp.float32),
    }

    uids = jax.random.randint(k_uid, (batch, 1), 0, max_uid + 1).astype(jnp.float32)
    iids = jax.random.randint(k_iid, (batch, 1), 0, max_mid + 1).astype(jnp.float32)
    genres = jax.random.bernoulli(k_gen, 0.3, (batch, fm_feature_size - 2)).astype(jnp.float32)
    x = jnp.concatenate([uids, iids, genres], axis=1)   # (batch, fm_feature_size)

    out = fm_forward(x, params, max_uid=max_uid, max_mid=max_mid,
                     fm_feature_size=fm_feature_size)
    out = jax.block_until_ready(out)

    ref = fm_forward_ref(x, params, max_uid=max_uid, max_mid=max_mid,
                         fm_feature_size=fm_feature_size)
    assert out.shape == (batch, 1)
    assert jnp.allclose(out, ref, atol=1e-5, rtol=1e-5)

    print("KERNEL_OK")
</pallas_src>

<mosaic_0001>
module attributes {stable_mosaic.version = 11 : i64} {
  func.func @fm_kernel(%arg0: i32, %arg1: memref<8x128xf32, #tpu.memory_space<vmem>>, %arg2: memref<24x128xf32, #tpu.memory_space<vmem>>, %arg3: memref<16x8xf32, #tpu.memory_space<vmem>>, %arg4: memref<8x8xf32, #tpu.memory_space<vmem>>, %arg5: memref<1x1xf32, #tpu.memory_space<smem>>, %arg6: memref<1x128xf32, #tpu.memory_space<vmem>>) attributes {dimension_semantics = [#tpu.dimension_semantics<parallel>], iteration_bounds = array<i64: 1>, scalar_prefetch = 0 : i64, scratch_operands = 0 : i64, tpu.core_type = #tpu.core_type<tc>, window_params = [{transform_indices = @transform_0, window_bounds = array<i64: 8, 128>}, {transform_indices = @transform_1, window_bounds = array<i64: 24, 128>}, {pipeline_mode = #tpu.pipeline_mode<synchronous>, transform_indices = @transform_2, window_bounds = array<i64: 16, 8>}, {pipeline_mode = #tpu.pipeline_mode<synchronous>, transform_indices = @transform_3, window_bounds = array<i64: 8, 8>}, {transform_indices = @transform_4, window_bounds = array<i64: 1, 1>}, {transform_indices = @transform_5, window_bounds = array<i64: 1, 128>}]} {
    %c0 = arith.constant 0 : index
    %c0_0 = arith.constant 0 : index
    %0 = vector.load %arg1[%c0, %c0_0] : memref<8x128xf32, #tpu.memory_space<vmem>>, vector<8x128xf32>
    %c0_1 = arith.constant 0 : index
    %c0_2 = arith.constant 0 : index
    %1 = vector.load %arg2[%c0_1, %c0_2] : memref<24x128xf32, #tpu.memory_space<vmem>>, vector<24x128xf32>
    %c0_3 = arith.constant 0 : index
    %c0_4 = arith.constant 0 : index
    %2 = vector.load %arg3[%c0_3, %c0_4] : memref<16x8xf32, #tpu.memory_space<vmem>>, vector<16x8xf32>
    %cst = arith.constant dense<0.000000e+00> : vector<16x128xf32>
    %3 = tpu.matmul %2, %0, %cst {dimension_numbers = #tpu.dot_dimension_numbers<[1], [0], [0], [1], [0, 0, 1, 1], [], []>} : vector<16x8xf32>, vector<8x128xf32>, vector<16x128xf32> -> vector<16x128xf32>
    %c0_5 = arith.constant 0 : index
    %c0_6 = arith.constant 0 : index
    %4 = vector.load %arg4[%c0_5, %c0_6] : memref<8x8xf32, #tpu.memory_space<vmem>>, vector<8x8xf32>
    %5 = arith.mulf %0, %0 : vector<8x128xf32>
    %cst_7 = arith.constant dense<0.000000e+00> : vector<8x128xf32>
    %6 = tpu.matmul %4, %5, %cst_7 {dimension_numbers = #tpu.dot_dimension_numbers<[1], [0], [0], [1], [0, 0, 1, 1], [], []>} : vector<8x8xf32>, vector<8x128xf32>, vector<8x128xf32> -> vector<8x128xf32>
    %7 = vector.extract_strided_slice %3 {offsets = [0, 0], sizes = [8, 128], strides = [1, 1]} : vector<16x128xf32> to vector<8x128xf32>
    %8 = vector.extract_strided_slice %1 {offsets = [0, 0], sizes = [8, 128], strides = [1, 1]} : vector<24x128xf32> to vector<8x128xf32>
    %9 = arith.addf %7, %8 : vector<8x128xf32>
    %10 = vector.extract_strided_slice %3 {offsets = [8, 0], sizes = [1, 128], strides = [1, 1]} : vector<16x128xf32> to vector<1x128xf32>
    %11 = vector.extract_strided_slice %1 {offsets = [8, 0], sizes = [1, 128], strides = [1, 1]} : vector<24x128xf32> to vector<1x128xf32>
    %12 = arith.addf %10, %11 : vector<1x128xf32>
    %13 = vector.extract_strided_slice %1 {offsets = [16, 0], sizes = [8, 128], strides = [1, 1]} : vector<24x128xf32> to vector<8x128xf32>
    %14 = arith.addf %6, %13 : vector<8x128xf32>
    %15 = arith.mulf %9, %9 : vector<8x128xf32>
    %16 = arith.subf %15, %14 : vector<8x128xf32>
    %cst_8 = arith.constant dense<0.000000e+00> : vector<128xf32>
    %17 = vector.multi_reduction <add>, %16, %cst_8 [0] : vector<8x128xf32> to vector<128xf32>
    %18 = vector.shape_cast %17 : vector<128xf32> to vector<1x128xf32>
    %cst_9 = arith.constant 5.000000e-01 : f32
    %19 = vector.broadcast %cst_9 : f32 to vector<1x128xf32>
    %20 = arith.mulf %19, %18 : vector<1x128xf32>
    %c0_10 = arith.constant 0 : index
    %c0_11 = arith.constant 0 : index
    %21 = memref.load %arg5[%c0_10, %c0_11] : memref<1x1xf32, #tpu.memory_space<smem>>
    %22 = vector.broadcast %21 : f32 to vector<1x128xf32>
    %23 = arith.addf %22, %12 : vector<1x128xf32>
    %24 = arith.addf %23, %20 : vector<1x128xf32>
    %c0_12 = arith.constant 0 : index
    %c0_13 = arith.constant 0 : index
    %25 = vector.load %arg6[%c0_12, %c0_13] : memref<1x128xf32, #tpu.memory_space<vmem>>, vector<1x128xf32>
    tpu.vector_store %arg6[%c0_12, %c0_13], %24 {strides = array<i32>} : memref<1x128xf32, #tpu.memory_space<vmem>>, vector<1x128xf32>,
    return
  }
  func.func @transform_0(%arg0: i32) -> (i32, i32) {
    %c0_i32 = arith.constant 0 : i32
    %c0_i32_0 = arith.constant 0 : i32
    return %c0_i32, %arg0 : i32, i32
  }
  func.func @transform_1(%arg0: i32) -> (i32, i32) {
    %c0_i32 = arith.constant 0 : i32
    %c0_i32_0 = arith.constant 0 : i32
    return %c0_i32, %arg0 : i32, i32
  }
  func.func @transform_2(%arg0: i32) -> (i32, i32) {
    %c0_i32 = arith.constant 0 : i32
    %c0_i32_0 = arith.constant 0 : i32
    %c0_i32_1 = arith.constant 0 : i32
    return %c0_i32, %c0_i32_0 : i32, i32
  }
  func.func @transform_3(%arg0: i32) -> (i32, i32) {
    %c0_i32 = arith.constant 0 : i32
    %c0_i32_0 = arith.constant 0 : i32
    %c0_i32_1 = arith.constant 0 : i32
    return %c0_i32, %c0_i32_0 : i32, i32
  }
  func.func @transform_4(%arg0: i32) -> (i32, i32) {
    %c0_i32 = arith.constant 0 : i32
    %c0_i32_0 = arith.constant 0 : i32
    %c0_i32_1 = arith.constant 0 : i32
    return %c0_i32, %c0_i32_0 : i32, i32
  }
  func.func @transform_5(%arg0: i32) -> (i32, i32) {
    %c0_i32 = arith.constant 0 : i32
    %c0_i32_0 = arith.constant 0 : i32
    return %c0_i32, %arg0 : i32, i32
  }
}

</mosaic_0001>

<llo_original>
// kernel: tpu_custom_call.1
$region0: #{tpu_custom_call.1}
  #allocation0 [shape = 'u32[]', space=smem, size = 0x4, offset = 0x4, fixed_abs, tag = 'smem constant byte address 0x4 - core index']
  #allocation1 [shape = 'u32[144,128]{1,0:T(1,128)}', space=vmem, size = 0x12000, scoped, tag = 'internal scratch']
  #allocation2 [shape = 'f32[1,1]{1,0:T(1,128)S(6)}', space=smem, size = 0x200, scoped, tag = 'scoped memory for tpu_custom_call.1']
  %s0 = inlined_call_operand.hbm [shape: f32[8,128], index: 0, kind: input, shape index: {}]
  %s1 = inlined_call_operand.vmem [shape: f32[24,128], index: 1, kind: input, shape index: {}]
  %s2 = inlined_call_operand.vmem [shape: f32[16,8], index: 2, kind: input, shape index: {}]
  %s3 = inlined_call_operand.hbm [shape: f32[8,8], index: 3, kind: input, shape index: {}]
  %s4 = inlined_call_operand.<no memory space> [shape: f32[1,1], index: 4, kind: input, shape index: {}]
  %s5 = inlined_call_operand.hbm [shape: f32[1,128], index: 5, kind: output, shape index: {}]
  %s6 = sld [smem:[#allocation0]]
  $region38: #{tpu_custom_call.1} parent=0
    _
  %s8 = ssub.s32 1, %s6
  %s9 = scalar_select 0, %s8, %s6
  %10 = sst [smem:[#allocation2]] %s4
  $region1: #{tpu_custom_call.1} parent=0
    #allocation3 [shape = 'u8[4096]{0}', space=vmem, size = 0x1000, scoped, tag = 'input window, operand 0, single buffered']
    #allocation4 [shape = 's32[1]{0}', space=sflag, size = 0x4, scoped, tag = 'scoped memory for tpu_custom_call.1']
    #allocation5 [shape = 's32[1]{0}', space=sflag, size = 0x4, scoped, tag = 'scoped memory for tpu_custom_call.1']
    #allocation6 [shape = 'u8[4096]{0}', space=vmem, size = 0x1000, scoped, tag = 'input window, operand 3, single buffered']
    #allocation7 [shape = 's32[1]{0}', space=sflag, size = 0x4, scoped, tag = 'scoped memory for tpu_custom_call.1']
    #allocation8 [shape = 'u8[512]{0}', space=vmem, size = 0x400, scoped, tag = 'output window, operand 0, single buffered']
    %11 = vsyncpa [#allocation4], 0
    %12 = vsyncpa [#allocation7], 0
    %13 = vsyncpa [#allocation5], 0
    // Predicated region
    $region2: #{tpu_custom_call.1} parent=1 // pred_check
      _
    $region3: #{tpu_custom_call.1} parent=1 // pred_check_branch
      %15 = sbr.rel (0) target = $region5
    $region4: #{tpu_custom_call.1} parent=1 // pred_region
      %s17 = ssub.s32 128, 128
      %18 = vsyncadd [#allocation4], %s17
      %s20 = sshll.u32 [#allocation3], 4
      %s21 = int_to_ptr.vmem [resolvable:$true] %s20
      %23 = dma.hbm_to_vmem [thread:$0]  %s0, 128, %s21, [#allocation4]
    $region5: #{tpu_custom_call.1} parent=1 // pred_fallthru
      _
    // Predicated region
    $region6: #{tpu_custom_call.1} parent=1 // pred_check
      _
    $region7: #{tpu_custom_call.1} parent=1 // pred_check_branch
      %25 = sbr.rel (0) target = $region9
    $region8: #{tpu_custom_call.1} parent=1 // pred_region
      _
    $region9: #{tpu_custom_call.1} parent=1 // pred_fallthru
      _
    // Predicated region
    $region10: #{tpu_custom_call.1} parent=1 // pred_check
      _
    $region11: #{tpu_custom_call.1} parent=1 // pred_check_branch
      %27 = sbr.rel (0) target = $region13
    $region12: #{tpu_custom_call.1} parent=1 // pred_region
      _
    $region13: #{tpu_custom_call.1} parent=1 // pred_fallthru
      _
    // Predicated region
    $region14: #{tpu_custom_call.1} parent=1 // pred_check
      _
    $region15: #{tpu_custom_call.1} parent=1 // pred_check_branch
      %29 = sbr.rel (0) target = $region17
    $region16: #{tpu_custom_call.1} parent=1 // pred_region
      %s31 = ssub.s32 128, 128
      %32 = vsyncadd [#allocation7], %s31
      %s34 = sshll.u32 [#allocation6], 4
      %s35 = int_to_ptr.vmem [resolvable:$true] %s34
      %37 = dma.hbm_to_vmem [thread:$0]  %s3, 128, %s35, [#allocation7]
    $region17: #{tpu_custom_call.1} parent=1 // pred_fallthru
      _
    // Predicated region
    $region18: #{tpu_custom_call.1} parent=1 // pred_check
      _
    $region19: #{tpu_custom_call.1} parent=1 // pred_check_branch
      %39 = sbr.rel (0) target = $region21
    $region20: #{tpu_custom_call.1} parent=1 // pred_region
      _
    $region21: #{tpu_custom_call.1} parent=1 // pred_fallthru
      _
    // Predicated region
    $region22: #{tpu_custom_call.1} parent=1 // pred_check
      _
    $region23: #{tpu_custom_call.1} parent=1 // pred_check_branch
      %41 = sbr.rel (0) target = $region25
    $region24: #{tpu_custom_call.1} parent=1 // pred_region
      %42 = dma.done [#allocation4], 128
    $region25: #{tpu_custom_call.1} parent=1 // pred_fallthru
      _
    // Predicated region
    $region26: #{tpu_custom_call.1} parent=1 // pred_check
      _
    $region27: #{tpu_custom_call.1} parent=1 // pred_check_branch
      %44 = sbr.rel (0) target = $region29
    $region28: #{tpu_custom_call.1} parent=1 // pred_region
      %45 = dma.done [#allocation7], 128
    $region29: #{tpu_custom_call.1} parent=1 // pred_fallthru
      _
    %v46 = vld [vmem:[#allocation3] sm:$0xff]
    %v47 = vld [vmem:[%s1] sm:$0xff]
    %v48 = vld [vmem:[%s1 + $0x8] sm:$0xff]
    %v49 = vld [vmem:[%s1 + $0x10] sm:$0xff]
    %v50 = vld [vmem:[%s2] sm:$0xff]
    %v51 = vld [vmem:[%s2 + $0x8] sm:$0xff]
    %vm52 = vcmask 64512
    %v54 = vsel %vm52, %v50, 0
    %v57 = vsel %vm52, %v51, 0
    %59 = vmatprep.subr.mxu0 0.0
    %60 = vmatpush1.msra.mxu0 %v46
    %61 = vmatprep.subr.mxu0 0.0
    %62 = vmatpush1.msra.mxu0 0.0
    %63 = vmatprep.subr.mxu0 0.0
    %64 = vmatpush1.msra.mxu0 0.0
    %65 = vmatprep.subr.mxu0 0.0
    %66 = vmatpush1.msra.mxu0 0.0
    %67 = vmatprep.subr.mxu0 0.0
    %68 = vmatpush1.msra.mxu0 0.0
    %69 = vmatprep.subr.mxu0 0.0
    %70 = vmatpush1.msra.mxu0 0.0
    %71 = vmatprep.subr.mxu0 0.0
    %72 = vmatpush1.msra.mxu0 0.0
    %73 = vmatprep.subr.mxu0 0.0
    %74 = vmatpush1.msra.mxu0 0.0
    %75 = vmatprep.subr.mxu0 0.0
    %76 = vmatpush1.msra.mxu0 0.0
    %77 = vmatprep.subr.mxu0 0.0
    %78 = vmatpush1.msra.mxu0 0.0
    %79 = vmatprep.subr.mxu0 0.0
    %80 = vmatpush1.msra.mxu0 0.0
    %81 = vmatprep.subr.mxu0 0.0
    %82 = vmatpush1.msra.mxu0 0.0
    %83 = vmatprep.subr.mxu0 0.0
    %84 = vmatpush1.msra.mxu0 0.0
    %85 = vmatprep.subr.mxu0 0.0
    %86 = vmatpush1.msra.mxu0 0.0
    %87 = vmatprep.subr.mxu0 0.0
    %88 = vmatpush1.msra.mxu0 0.0
    %89 = vmatprep.subr.mxu0 0.0
    %90 = vmatpush1.msra.mxu0 0.0
    %91 = vmatprep.subr.mxu0 0.0
    %92 = vmatpush1.msra.mxu0 0.0
    %93 = vmatprep.subr.mxu0 0.0
    %94 = vmatpush1.msra.mxu0 0.0
    %95 = vmatprep.subr.mxu0 0.0
    %96 = vmatpush1.msra.mxu0 0.0
    %97 = vmatprep.subr.mxu0 0.0
    %98 = vmatpush1.msra.mxu0 0.0
    %99 = vmatprep.subr.mxu0 0.0
    %100 = vmatpush1.msra.mxu0 0.0
    %101 = vmatprep.subr.mxu0 0.0
    %102 = vmatpush1.msra.mxu0 0.0
    %103 = vmatprep.subr.mxu0 0.0
    %104 = vmatpush1.msra.mxu0 0.0
    %105 = vmatprep.subr.mxu0 0.0
    %106 = vmatpush1.msra.mxu0 0.0
    %107 = vmatprep.subr.mxu0 0.0
    %108 = vmatpush1.msra.mxu0 0.0
    %109 = vmatprep.subr.mxu0 0.0
    %110 = vmatpush1.msra.mxu0 0.0
    %111 = vmatprep.subr.mxu0 0.0
    %112 = vmatpush1.msra.mxu0 0.0
    %113 = vmatprep.subr.mxu0 0.0
    %114 = vmatpush1.msra.mxu0 0.0
    %115 = vmatprep.subr.mxu0 0.0
    %116 = vmatpush1.msra.mxu0 0.0
    %117 = vmatprep.subr.mxu0 0.0
    %118 = vmatpush1.msra.mxu0 0.0
    %119 = vmatprep.subr.mxu0 0.0
    %120 = vmatpush1.msra.mxu0 0.0
    %121 = vmatprep.subr.mxu0 0.0
    %122 = vmatpush1.msra.mxu0 0.0
    %123 = vmatprep.mubr.f32.mxu0 0.0
    %124 = vmatmul.mubr.f32.gmra.mrb[0].mxu0 %v54
    %v125 = vpop.f32.mrb[0].mxu0
    %v126 = vadd.f32 0.0, %v125
    %v127 = vpop.f32.mrb[0].mxu0
    %128 = vmatprep.mubr.f32.mxu0 0.0
    %129 = vmatmul.mubr.f32.gmra.mrb[0].mxu0 %v57
    %v130 = vpop.f32.mrb[0].mxu0
    %v131 = vadd.f32 0.0, %v130
    %v132 = vpop.f32.mrb[0].mxu0
    %133 = vdwg.mxu0
    %v134 = vld [vmem:[#allocation6] sm:$0xff]
    %v135 = vmul.f32 %v46, %v46
    %v136 = vadd.f32 %v126, %v47
    %v137 = vadd.f32 %v131, %v48
    %v139 = vsel %vm52, %v134, 0
    %141 = vmatprep.subr.mxu0 0.0
    %142 = vmatpush1.msra.mxu0 %v135
    %143 = vmatprep.subr.mxu0 0.0
    %144 = vmatpush1.msra.mxu0 0.0
    %145 = vmatprep.subr.mxu0 0.0
    %146 = vmatpush1.msra.mxu0 0.0
    %147 = vmatprep.subr.mxu0 0.0
    %148 = vmatpush1.msra.mxu0 0.0
    %149 = vmatprep.subr.mxu0 0.0
    %150 = vmatpush1.msra.mxu0 0.0
    %151 = vmatprep.subr.mxu0 0.0
    %152 = vmatpush1.msra.mxu0 0.0
    %153 = vmatprep.subr.mxu0 0.0
    %154 = vmatpush1.msra.mxu0 0.0
    %155 = vmatprep.subr.mxu0 0.0
    %156 = vmatpush1.msra.mxu0 0.0
    %157 = vmatprep.subr.mxu0 0.0
    %158 = vmatpush1.msra.mxu0 0.0
    %159 = vmatprep.subr.mxu0 0.0
    %160 = vmatpush1.msra.mxu0 0.0
    %161 = vmatprep.subr.mxu0 0.0
    %162 = vmatpush1.msra.mxu0 0.0
    %163 = vmatprep.subr.mxu0 0.0
    %164 = vmatpush1.msra.mxu0 0.0
    %165 = vmatprep.subr.mxu0 0.0
    %166 = vmatpush1.msra.mxu0 0.0
    %167 = vmatprep.subr.mxu0 0.0
    %168 = vmatpush1.msra.mxu0 0.0
    %169 = vmatprep.subr.mxu0 0.0
    %170 = vmatpush1.msra.mxu0 0.0
    %171 = vmatprep.subr.mxu0 0.0
    %172 = vmatpush1.msra.mxu0 0.0
    %173 = vmatprep.subr.mxu0 0.0
    %174 = vmatpush1.msra.mxu0 0.0
    %175 = vmatprep.subr.mxu0 0.0
    %176 = vmatpush1.msra.mxu0 0.0
    %177 = vmatprep.subr.mxu0 0.0
    %178 = vmatpush1.msra.mxu0 0.0
    %179 = vmatprep.subr.mxu0 0.0
    %180 = vmatpush1.msra.mxu0 0.0
    %181 = vmatprep.subr.mxu0 0.0
    %182 = vmatpush1.msra.mxu0 0.0
    %183 = vmatprep.subr.mxu0 0.0
    %184 = vmatpush1.msra.mxu0 0.0
    %185 = vmatprep.subr.mxu0 0.0
    %186 = vmatpush1.msra.mxu0 0.0
    %187 = vmatprep.subr.mxu0 0.0
    %188 = vmatpush1.msra.mxu0 0.0
    %189 = vmatprep.subr.mxu0 0.0
    %190 = vmatpush1.msra.mxu0 0.0
    %191 = vmatprep.subr.mxu0 0.0
    %192 = vmatpush1.msra.mxu0 0.0
    %193 = vmatprep.subr.mxu0 0.0
    %194 = vmatpush1.msra.mxu0 0.0
    %195 = vmatprep.subr.mxu0 0.0
    %196 = vmatpush1.msra.mxu0 0.0
    %197 = vmatprep.subr.mxu0 0.0
    %198 = vmatpush1.msra.mxu0 0.0
    %199 = vmatprep.subr.mxu0 0.0
    %200 = vmatpush1.msra.mxu0 0.0
    %201 = vmatprep.subr.mxu0 0.0
    %202 = vmatpush1.msra.mxu0 0.0
    %203 = vmatprep.subr.mxu0 0.0
    %204 = vmatpush1.msra.mxu0 0.0
    %205 = vmatprep.mubr.f32.mxu0 0.0
    %206 = vmatmul.mubr.f32.gmra.mrb[0].mxu0 %v139
    %v207 = vpop.f32.mrb[0].mxu0
    %v208 = vadd.f32 %v49, %v207
    %v209 = vpop.f32.mrb[0].mxu0
    %210 = vdwg.mxu0
    %v211 = vmul.f32 %v136, %v136
    %v212 = vsub.f32 %v211, %v208
    %v213 = vrot.slane %v212, 4
    %v214 = vadd.f32 %v212, %v213
    %v215 = vrot.slane %v214, 2
    %v216 = vadd.f32 %v214, %v215
    %v217 = vrot.slane %v216, 1
    %v218 = vadd.f32 %v216, %v217
    %v219 = vmul.f32 %v218, 0.5
    %s220 = sld [smem:[#allocation2]]
    %v221 = vstv %s220
    %v222 = vadd.f32 %v221, %v137
    %v223 = vadd.f32 %v222, %v219
    %224 = vst [vmem:[#allocation8] sm:$0x1] %v223
    // Predicated region
    $region30: #{tpu_custom_call.1} parent=1 // pred_check
      _
    $region31: #{tpu_custom_call.1} parent=1 // pred_check_branch
      %226 = sbr.rel (0) target = $region33
    $region32: #{tpu_custom_call.1} parent=1 // pred_region
      %s228 = ssub.s32 16, 16
      %229 = vsyncadd [#allocation5], %s228
      %s231 = sshll.u32 [#allocation8], 4
      %s232 = int_to_ptr.vmem [resolvable:$true] %s231
      %234 = dma.vmem_to_hbm [thread:$0]  %s232, 16, %s5, [#allocation5]
    $region33: #{tpu_custom_call.1} parent=1 // pred_fallthru
      _
    // Predicated region
    $region34: #{tpu_custom_call.1} parent=1 // pred_check
      _
    $region35: #{tpu_custom_call.1} parent=1 // pred_check_branch
      %236 = sbr.rel (0) target = $region37
    $region36: #{tpu_custom_call.1} parent=1 // pred_region
      %237 = dma.done [#allocation5], 16
    $region37: #{tpu_custom_call.1} parent=1 // pred_fallthru
      _
    %238 = vsyncpa [#allocation4], 1
    %239 = vsyncpa [#allocation7], 1
    %240 = vsyncpa [#allocation5], 1

</llo_original>
